<compile_context>
chip_gen: v6e
topology: v6e:2x2x1
jax: 0.10.0
libtpu: 0.0.40
codegen_flags: <defaults>
</compile_context>

<pallas_src>
import jax
import jax.numpy as jnp
from jax.experimental import pallas as pl
from jax.experimental.pallas import tpu as pltpu


def _round_up(v, m):
    return ((v + m - 1) // m) * m


def _make_avgpool_bn_kernel(stride, C, H, W, Ho):
    """Fused kernel for one (static) geometry.  Layout inside the kernel:
       rows (H / Ho) live in sublanes, the merged W*C axis lives in lanes."""
    WC = W * C
    # Number of output rows whose 3x3 window has an in-bounds bottom-neighbor row.
    bot_cnt = max(0, min(Ho, (H - 2) // stride + 1))

    def kernel(x_ref, comb_ref, shift_ref, o_ref, acc_ref, wsum_ref):
        # x_ref:     (bt, H,  W*C)  lane-dense merged NHWC input (no halo padding)
        # comb_ref:  (Ho, W*C)      1/count(h,w) * bn_scale(c)  (count_include_pad=False)
        # shift_ref: (1,  W*C)      -running_mean(c) * bn_scale(c), tiled over W
        # o_ref:     (bt, Ho, W*C)  H already strided; W stride applied in the epilogue
        # acc_ref, wsum_ref: f32 VMEM scratch, (bt, Ho, W*C)

        def rows(start, count):
            # Output row h_o reads input row stride*h_o + offset: a (possibly strided)
            # sublane read straight from the input ref.
            if stride == 1:
                return x_ref[:, start:start + count, :]
            return x_ref[:, pl.ds(start, count, stride), :]

        # ---- H direction: separable 3-tap, strided, halo via partial-range accumulates.
        acc_ref[...] = rows(0, Ho).astype(jnp.float32)                 # center tap (init)
        if Ho > 1:                                                     # top neighbor (h_o >= 1)
            acc_ref[:, 1:, :] = (acc_ref[:, 1:, :]
                                 + rows(stride - 1, Ho - 1).astype(jnp.float32))
        if bot_cnt > 0:                                                # bottom neighbor
            acc_ref[:, :bot_cnt, :] = (acc_ref[:, :bot_cnt, :]
                                       + rows(1, bot_cnt).astype(jnp.float32))

        # ---- W direction: 3-tap along the merged lane dim (a W-shift is a +-C lane shift).
        wsum_ref[...] = acc_ref[...]
        wsum_ref[:, :, C:] = wsum_ref[:, :, C:] + acc_ref[:, :, :WC - C]       # left tap
        wsum_ref[:, :, :WC - C] = wsum_ref[:, :, :WC - C] + acc_ref[:, :, C:]  # right tap

        # ---- single fused FMA: avg-pool divisor (count_include_pad=False) + eval-mode BN.
        y = wsum_ref[...] * comb_ref[...][None, :, :] + shift_ref[...][None, :, :]
        o_ref[...] = y.astype(o_ref.dtype)

    return kernel


def _vmem_budget():
    """(per-kernel live-VMEM target, scoped vmem limit) per TPU generation."""
    try:
        kind = jax.devices()[0].device_kind.lower()
    except Exception:
        kind = ""
    if ("v5 lite" in kind) or ("v5e" in kind) or ("v6" in kind):
        # 128 MiB physical VMEM: bigger blocks amortize per-grid-step overhead.
        return 48 * 1024 * 1024, 96 * 1024 * 1024
    # Conservative default that also fits v7x (64 MiB physical, 32 MiB scoped).
    return 20 * 1024 * 1024, 32 * 1024 * 1024


def avgpool_bn_forward(x, running_mean, running_var, *, stride=1, eps=1e-5):
    """AvgPoolBN.forward(x) for NCHW x: AvgPool2d(3, stride, 1, count_include_pad=False)
    followed by BatchNorm2d(C, affine=False) in eval mode."""
    N, C, H, W = x.shape
    dtype = x.dtype
    WC = W * C
    Ho = (H - 1) // stride + 1
    Wo = (W - 1) // stride + 1

    # Layout plumbing: channels-last, then merge W*C into one lane-dense trailing dim
    # (the reshape itself is free in HBM).
    # TODO(synk): the NCHW<->NHWC transposes are one HBM relayout pass each; they only
    # disappear if the surrounding model is kept NHWC end-to-end.
    x_flat = jnp.transpose(x, (0, 2, 3, 1)).reshape(N, H, WC)

    # Fold the count_include_pad=False divisor and BN(affine=False) into one per-(row,lane)
    # multiplier + per-lane shift (tiny tables, resident across grid steps).
    out_rows = stride * jnp.arange(Ho)
    cnt_h = (jnp.minimum(out_rows + 1, H - 1) - jnp.maximum(out_rows - 1, 0) + 1).astype(jnp.float32)
    cols = jnp.arange(W)
    cnt_w = (jnp.minimum(cols + 1, W - 1) - jnp.maximum(cols - 1, 0) + 1).astype(jnp.float32)
    inv_cnt = 1.0 / (cnt_h[:, None] * cnt_w[None, :])                       # (Ho, W)

    bn_scale = 1.0 / jnp.sqrt(running_var.astype(jnp.float32) + eps)        # (C,)
    bn_shift = -running_mean.astype(jnp.float32) * bn_scale
    comb = (inv_cnt[:, :, None] * bn_scale[None, None, :]).reshape(Ho, WC)  # (Ho, W*C)
    shift_row = jnp.tile(bn_shift, (W,)).reshape(1, WC)                     # (1, W*C)

    # Batch tile from the REAL (8,128)-padded VMEM footprint: 2x double-buffered input and
    # output blocks + two f32 scratch accumulators + headroom for compiler temporaries.
    itemsize = jnp.dtype(dtype).itemsize
    hp, hop, wcp = _round_up(H, 8), _round_up(Ho, 8), _round_up(WC, 128)
    vmem_target, vmem_limit = _vmem_budget()

    def vmem_bytes(bt):
        in_blk = bt * hp * wcp * itemsize
        out_blk = bt * hop * wcp * itemsize
        scratch = 2 * bt * hop * wcp * 4
        temps = 2 * bt * hop * wcp * 4
        return 2 * in_blk + 2 * out_blk + scratch + temps

    bt = max(1, min(N, vmem_target // max(vmem_bytes(1), 1)))
    if N >= 2:
        bt = min(bt, N // 2)     # >= 2 "parallel" grid steps so v7x's 2 TCs both get work
    bt = max(1, bt)
    while N % bt:
        bt -= 1
    grid = (N // bt,)

    flops = 6 * N * Ho * W * C                       # 4 adds + 1 FMA per output element
    bytes_accessed = (N * H * WC + N * Ho * WC) * itemsize

    kernel = _make_avgpool_bn_kernel(stride, C, H, W, Ho)

    y_flat = pl.pallas_call(
        kernel,
        out_shape=jax.ShapeDtypeStruct((N, Ho, WC), dtype),
        grid_spec=pltpu.PrefetchScalarGridSpec(
            num_scalar_prefetch=0,
            grid=grid,
            in_specs=[
                pl.BlockSpec((bt, H, WC), lambda b: (b, 0, 0)),
                pl.BlockSpec((Ho, WC), lambda b: (0, 0)),
                pl.BlockSpec((1, WC), lambda b: (0, 0)),
            ],
            out_specs=pl.BlockSpec((bt, Ho, WC), lambda b: (b, 0, 0)),
            scratch_shapes=[
                pltpu.VMEM((bt, Ho, WC), jnp.float32),
                pltpu.VMEM((bt, Ho, WC), jnp.float32),
            ],
        ),
        compiler_params=pltpu.CompilerParams(
            dimension_semantics=("parallel",),
            vmem_limit_bytes=vmem_limit,
        ),
        cost_estimate=pl.CostEstimate(
            flops=flops, transcendentals=0, bytes_accessed=bytes_accessed),
    )(x_flat, comb, shift_row)

    # Epilogue: un-merge lanes; subsample W for strided cells; back to NCHW.
    # TODO(synk): the W-direction stride needs an in-kernel lane-group compaction (lane
    # gather) to be fully fused; done here instead, fused by XLA into the NCHW transpose.
    y = y_flat.reshape(N, Ho, W, C)
    if stride > 1:
        y = y[:, :, ::stride, :]
    return jnp.transpose(y, (0, 3, 1, 2))


def _reference_avgpool_bn(x, running_mean, running_var, stride, eps=1e-5):
    """Pure-JAX reference matching nn.AvgPool2d(3, stride, 1, count_include_pad=False)
    + nn.BatchNorm2d(affine=False) in eval mode."""
    N, C, H, W = x.shape
    Ho = (H - 1) // stride + 1
    Wo = (W - 1) // stride + 1
    xp = jnp.pad(x.astype(jnp.float32), ((0, 0), (0, 0), (1, 1), (1, 1)))
    op = jnp.pad(jnp.ones((1, 1, H, W), jnp.float32), ((0, 0), (0, 0), (1, 1), (1, 1)))
    s = jnp.zeros((N, C, Ho, Wo), jnp.float32)
    c = jnp.zeros((1, 1, Ho, Wo), jnp.float32)
    for di in range(3):
        for dj in range(3):
            he = di + stride * (Ho - 1) + 1
            we = dj + stride * (Wo - 1) + 1
            s = s + xp[:, :, di:he:stride, dj:we:stride]
            c = c + op[:, :, di:he:stride, dj:we:stride]
    pooled = s / c
    inv_std = 1.0 / jnp.sqrt(running_var.astype(jnp.float32) + eps)
    y = (pooled - running_mean.astype(jnp.float32)[None, :, None, None]) \
        * inv_std[None, :, None, None]
    return y.astype(x.dtype)


if __name__ == "__main__":
    key = jax.random.PRNGKey(0)
    kx, km, kv = jax.random.split(key, 3)

    N, C, H, W = 2, 4, 16, 16
    x = jax.random.normal(kx, (N, C, H, W), dtype=jnp.float32)
    running_mean = 0.1 * jax.random.normal(km, (C,), dtype=jnp.float32)
    running_var = jax.random.uniform(kv, (C,), dtype=jnp.float32, minval=0.5, maxval=1.5)

    for stride in (1, 2):
        y = avgpool_bn_forward(x, running_mean, running_var, stride=stride)
        jax.block_until_ready(y)
        y_ref = _reference_avgpool_bn(x, running_mean, running_var, stride)

        Ho = (H - 1) // stride + 1
        Wo = (W - 1) // stride + 1
        assert y.shape == (N, C, Ho, Wo), (y.shape, (N, C, Ho, Wo))
        assert y.dtype == x.dtype
        assert bool(jnp.allclose(y, y_ref, rtol=1e-5, atol=1e-5)), f"mismatch at stride={stride}"

    print("KERNEL_OK")
</pallas_src>

<mosaic_0001>
module attributes {stable_mosaic.version = 11 : i64} {
  func.func @kernel(%arg0: i32, %arg1: memref<1x16x64xf32, #tpu.memory_space<vmem>>, %arg2: memref<16x64xf32, #tpu.memory_space<vmem>>, %arg3: memref<1x64xf32, #tpu.memory_space<vmem>>, %arg4: memref<1x16x64xf32, #tpu.memory_space<vmem>>, %arg5: memref<1x16x64xf32, #tpu.memory_space<vmem>>, %arg6: memref<1x16x64xf32, #tpu.memory_space<vmem>>) attributes {dimension_semantics = [#tpu.dimension_semantics<parallel>], iteration_bounds = array<i64: 2>, scalar_prefetch = 0 : i64, scratch_operands = 2 : i64, tpu.core_type = #tpu.core_type<tc>, window_params = [{transform_indices = @transform_0, window_bounds = array<i64: 1, 16, 64>}, {pipeline_mode = #tpu.pipeline_mode<synchronous>, transform_indices = @transform_1, window_bounds = array<i64: 16, 64>}, {pipeline_mode = #tpu.pipeline_mode<synchronous>, transform_indices = @transform_2, window_bounds = array<i64: 1, 64>}, {transform_indices = @transform_3, window_bounds = array<i64: 1, 16, 64>}]} {
    %c0 = arith.constant 0 : index
    %c0_0 = arith.constant 0 : index
    %c0_1 = arith.constant 0 : index
    %0 = vector.load %arg1[%c0, %c0_0, %c0_1] : memref<1x16x64xf32, #tpu.memory_space<vmem>>, vector<1x16x64xf32>
    %c0_2 = arith.constant 0 : index
    %c0_3 = arith.constant 0 : index
    %c0_4 = arith.constant 0 : index
    %1 = vector.load %arg5[%c0_2, %c0_3, %c0_4] : memref<1x16x64xf32, #tpu.memory_space<vmem>>, vector<1x16x64xf32>
    tpu.vector_store %arg5[%c0_2, %c0_3, %c0_4], %0 {strides = array<i32>} : memref<1x16x64xf32, #tpu.memory_space<vmem>>, vector<1x16x64xf32>,
    %c0_5 = arith.constant 0 : index
    %c1 = arith.constant 1 : index
    %c0_6 = arith.constant 0 : index
    %2 = vector.load %arg5[%c0_5, %c1, %c0_6] : memref<1x16x64xf32, #tpu.memory_space<vmem>>, vector<1x15x64xf32>
    %c0_7 = arith.constant 0 : index
    %c0_8 = arith.constant 0 : index
    %c0_9 = arith.constant 0 : index
    %3 = vector.load %arg1[%c0_7, %c0_8, %c0_9] : memref<1x16x64xf32, #tpu.memory_space<vmem>>, vector<1x15x64xf32>
    %4 = arith.addf %2, %3 : vector<1x15x64xf32>
    %c0_10 = arith.constant 0 : index
    %c1_11 = arith.constant 1 : index
    %c0_12 = arith.constant 0 : index
    %5 = vector.load %arg5[%c0_10, %c1_11, %c0_12] : memref<1x16x64xf32, #tpu.memory_space<vmem>>, vector<1x15x64xf32>
    tpu.vector_store %arg5[%c0_10, %c1_11, %c0_12], %4 {strides = array<i32>} : memref<1x16x64xf32, #tpu.memory_space<vmem>>, vector<1x15x64xf32>,
    %c0_13 = arith.constant 0 : index
    %c0_14 = arith.constant 0 : index
    %c0_15 = arith.constant 0 : index
    %6 = vector.load %arg5[%c0_13, %c0_14, %c0_15] : memref<1x16x64xf32, #tpu.memory_space<vmem>>, vector<1x15x64xf32>
    %c0_16 = arith.constant 0 : index
    %c1_17 = arith.constant 1 : index
    %c0_18 = arith.constant 0 : index
    %7 = vector.load %arg1[%c0_16, %c1_17, %c0_18] : memref<1x16x64xf32, #tpu.memory_space<vmem>>, vector<1x15x64xf32>
    %8 = arith.addf %6, %7 : vector<1x15x64xf32>
    %c0_19 = arith.constant 0 : index
    %c0_20 = arith.constant 0 : index
    %c0_21 = arith.constant 0 : index
    %9 = vector.load %arg5[%c0_19, %c0_20, %c0_21] : memref<1x16x64xf32, #tpu.memory_space<vmem>>, vector<1x15x64xf32>
    tpu.vector_store %arg5[%c0_19, %c0_20, %c0_21], %8 {strides = array<i32>} : memref<1x16x64xf32, #tpu.memory_space<vmem>>, vector<1x15x64xf32>,
    %c0_22 = arith.constant 0 : index
    %c0_23 = arith.constant 0 : index
    %c0_24 = arith.constant 0 : index
    %10 = vector.load %arg5[%c0_22, %c0_23, %c0_24] : memref<1x16x64xf32, #tpu.memory_space<vmem>>, vector<1x16x64xf32>
    %c0_25 = arith.constant 0 : index
    %c0_26 = arith.constant 0 : index
    %c0_27 = arith.constant 0 : index
    %11 = vector.load %arg6[%c0_25, %c0_26, %c0_27] : memref<1x16x64xf32, #tpu.memory_space<vmem>>, vector<1x16x64xf32>
    tpu.vector_store %arg6[%c0_25, %c0_26, %c0_27], %10 {strides = array<i32>} : memref<1x16x64xf32, #tpu.memory_space<vmem>>, vector<1x16x64xf32>,
    %c0_28 = arith.constant 0 : index
    %c0_29 = arith.constant 0 : index
    %c4 = arith.constant 4 : index
    %12 = vector.load %arg6[%c0_28, %c0_29, %c4] : memref<1x16x64xf32, #tpu.memory_space<vmem>>, vector<1x16x60xf32>
    %c0_30 = arith.constant 0 : index
    %c0_31 = arith.constant 0 : index
    %c0_32 = arith.constant 0 : index
    %13 = vector.load %arg5[%c0_30, %c0_31, %c0_32] : memref<1x16x64xf32, #tpu.memory_space<vmem>>, vector<1x16x60xf32>
    %14 = arith.addf %12, %13 : vector<1x16x60xf32>
    %c0_33 = arith.constant 0 : index
    %c0_34 = arith.constant 0 : index
    %c4_35 = arith.constant 4 : index
    %15 = vector.load %arg6[%c0_33, %c0_34, %c4_35] : memref<1x16x64xf32, #tpu.memory_space<vmem>>, vector<1x16x60xf32>
    tpu.vector_store %arg6[%c0_33, %c0_34, %c4_35], %14 {strides = array<i32>} : memref<1x16x64xf32, #tpu.memory_space<vmem>>, vector<1x16x60xf32>,
    %c0_36 = arith.constant 0 : index
    %c0_37 = arith.constant 0 : index
    %c0_38 = arith.constant 0 : index
    %16 = vector.load %arg6[%c0_36, %c0_37, %c0_38] : memref<1x16x64xf32, #tpu.memory_space<vmem>>, vector<1x16x60xf32>
    %c0_39 = arith.constant 0 : index
    %c0_40 = arith.constant 0 : index
    %c4_41 = arith.constant 4 : index
    %17 = vector.load %arg5[%c0_39, %c0_40, %c4_41] : memref<1x16x64xf32, #tpu.memory_space<vmem>>, vector<1x16x60xf32>
    %18 = arith.addf %16, %17 : vector<1x16x60xf32>
    %c0_42 = arith.constant 0 : index
    %c0_43 = arith.constant 0 : index
    %c0_44 = arith.constant 0 : index
    %19 = vector.load %arg6[%c0_42, %c0_43, %c0_44] : memref<1x16x64xf32, #tpu.memory_space<vmem>>, vector<1x16x60xf32>
    tpu.vector_store %arg6[%c0_42, %c0_43, %c0_44], %18 {strides = array<i32>} : memref<1x16x64xf32, #tpu.memory_space<vmem>>, vector<1x16x60xf32>,
    %c0_45 = arith.constant 0 : index
    %c0_46 = arith.constant 0 : index
    %c0_47 = arith.constant 0 : index
    %20 = vector.load %arg6[%c0_45, %c0_46, %c0_47] : memref<1x16x64xf32, #tpu.memory_space<vmem>>, vector<1x16x64xf32>
    %c0_48 = arith.constant 0 : index
    %c0_49 = arith.constant 0 : index
    %21 = vector.load %arg2[%c0_48, %c0_49] : memref<16x64xf32, #tpu.memory_space<vmem>>, vector<16x64xf32>
    %22 = vector.shape_cast %21 : vector<16x64xf32> to vector<1x16x64xf32>
    %23 = arith.mulf %20, %22 : vector<1x16x64xf32>
    %c0_50 = arith.constant 0 : index
    %c0_51 = arith.constant 0 : index
    %24 = vector.load %arg3[%c0_50, %c0_51] : memref<1x64xf32, #tpu.memory_space<vmem>>, vector<1x64xf32>
    %25 = vector.shape_cast %24 : vector<1x64xf32> to vector<1x1x64xf32>
    %26 = vector.broadcast %25 : vector<1x1x64xf32> to vector<1x16x64xf32>
    %27 = arith.addf %23, %26 : vector<1x16x64xf32>
    %c0_52 = arith.constant 0 : index
    %c0_53 = arith.constant 0 : index
    %c0_54 = arith.constant 0 : index
    %28 = vector.load %arg4[%c0_52, %c0_53, %c0_54] : memref<1x16x64xf32, #tpu.memory_space<vmem>>, vector<1x16x64xf32>
    tpu.vector_store %arg4[%c0_52, %c0_53, %c0_54], %27 {strides = array<i32>} : memref<1x16x64xf32, #tpu.memory_space<vmem>>, vector<1x16x64xf32>,
    return
  }
  func.func @transform_0(%arg0: i32) -> (i32, i32, i32) {
    %c0_i32 = arith.constant 0 : i32
    %c0_i32_0 = arith.constant 0 : i32
    %c0_i32_1 = arith.constant 0 : i32
    return %arg0, %c0_i32, %c0_i32_0 : i32, i32, i32
  }
  func.func @transform_1(%arg0: i32) -> (i32, i32) {
    %c0_i32 = arith.constant 0 : i32
    %c0_i32_0 = arith.constant 0 : i32
    %c0_i32_1 = arith.constant 0 : i32
    return %c0_i32, %c0_i32_0 : i32, i32
  }
  func.func @transform_2(%arg0: i32) -> (i32, i32) {
    %c0_i32 = arith.constant 0 : i32
    %c0_i32_0 = arith.constant 0 : i32
    %c0_i32_1 = arith.constant 0 : i32
    return %c0_i32, %c0_i32_0 : i32, i32
  }
  func.func @transform_3(%arg0: i32) -> (i32, i32, i32) {
    %c0_i32 = arith.constant 0 : i32
    %c0_i32_0 = arith.constant 0 : i32
    %c0_i32_1 = arith.constant 0 : i32
    return %arg0, %c0_i32, %c0_i32_0 : i32, i32, i32
  }
}

</mosaic_0001>

<llo_original>
// kernel: tpu_custom_call.1
$region0: #{tpu_custom_call.1}
  #allocation0 [shape = 'u32[]', space=smem, size = 0x4, offset = 0x4, fixed_abs, tag = 'smem constant byte address 0x4 - core index']
  #allocation1 [shape = 'u32[144,128]{1,0:T(1,128)}', space=vmem, size = 0x12000, scoped, tag = 'internal scratch']
  #allocation2 [shape = 'f32[1,16,64]{2,1,0:T(8,128)}', space=vmem, size = 0x2000, scoped, tag = 'scratch operand']
  #allocation3 [shape = 'f32[1,16,64]{2,1,0:T(8,128)}', space=vmem, size = 0x2000, scoped, tag = 'scratch operand']
  %s0 = inlined_call_operand.hbm [shape: f32[2,16,64], index: 0, kind: input, shape index: {}]
  %s1 = inlined_call_operand.hbm [shape: f32[16,64], index: 1, kind: input, shape index: {}]
  %s2 = inlined_call_operand.vmem [shape: f32[1,64], index: 2, kind: input, shape index: {}]
  %s3 = inlined_call_operand.hbm [shape: f32[2,16,64], index: 3, kind: output, shape index: {}]
  %s4 = sld [smem:[#allocation0]]
  $region53: #{tpu_custom_call.1} parent=0
    _
  %s6 = ssub.s32 1, %s4
  %s7 = scalar_select 0, %s6, %s4
  $region1: #{tpu_custom_call.1} parent=0
    #allocation4 [shape = 'u8[16384]{0}', space=vmem, size = 0x4000, scoped, tag = 'input window, operand 0']
    #allocation5 [shape = 's32[2]{0}', space=sflag, size = 0x8, scoped, tag = 'scoped memory for tpu_custom_call.1']
    #allocation6 [shape = 's32[2]{0}', space=sflag, size = 0x8, scoped, tag = 'scoped memory for tpu_custom_call.1']
    #allocation7 [shape = 'u8[8192]{0}', space=vmem, size = 0x2000, scoped, tag = 'input window, operand 1, single buffered']
    #allocation8 [shape = 's32[1]{0}', space=sflag, size = 0x4, scoped, tag = 'scoped memory for tpu_custom_call.1']
    #allocation9 [shape = 'u8[16384]{0}', space=vmem, size = 0x4000, scoped, tag = 'output window, operand 0']
    %8 = vsyncpa [#allocation5], 0
    %s9 = scalar_lea.sflag [#allocation5], 1
    %10 = vsyncpa %s9, 0
    %11 = vsyncpa [#allocation8], 0
    %12 = vsyncpa [#allocation6], 0
    %s13 = scalar_lea.sflag [#allocation6], 1
    %14 = vsyncpa %s13, 0
    loop: start=0, step=1, limit=4
    $region2: #{tpu_custom_call.1} parent=1 // loop_pre_header
      _
    $region3: #{tpu_custom_call.1} parent=1 // loop_header
      %s16 = sphi 0, %s20
      %p17 = scmp.ge.s32.totalorder %s16, 4
      %s26 = sphi 0, %s28
      %s29 = sphi 0, %s26
      %s30 = sphi 0, %s29
      %s46 = sphi 0, %s30
      %s50 = sphi 0, %s50
      %s52 = sphi 0, %s50
      %s53 = sphi 0, %s52
      %s67 = sphi 0, %s53
      %s71 = sphi 0, %s71
      %s73 = sphi 0, %s71
      %s74 = sphi 0, %s73
      %s88 = sphi 0, %s74
      %s94 = sphi 0, %s96
      %s97 = sphi 0, %s94
      %s98 = sphi 0, %s97
      %s114 = sphi 0, %s98
    $region4: #{tpu_custom_call.1} parent=1 // loop_header_branch
      %19 = sbr.rel (%p17) target = $region8
    $region5: #{tpu_custom_call.1} parent=1 // loop_body
      %s21 = ssub.s32 %s16, 1
      %s22 = ssub.s32 %s16, 2
      %s23 = sadd.s32 %s16, 1
      %s24 = ssub.s32 %s16, %s23
      %p25 = scmp.eq.s32.totalorder %s24, 0
      %s27 = sadd.s32 %s26, 1
      %s28 = scalar_select %p25, %s26, %s27
      %p31 = pneg %p25
      %p32 = scmp.eq.s32.totalorder %s16, 1
      %p33 = por %p31, %p32
      %p34 = scmp.ne.s32.totalorder %s26, %s29
      %p35 = scmp.eq.s32.totalorder %s16, 0
      %p36 = por %p34, %p35
      %p37 = scmp.ne.s32.totalorder %s26, %s29
      %p38 = scmp.eq.s32.totalorder %s21, 1
      %p39 = por %p37, %p38
      %p40 = scmp.ne.s32.totalorder %s29, %s30
      %p41 = scmp.eq.s32.totalorder %s21, 0
      %p42 = por %p40, %p41
      %p43 = scmp.ne.s32.totalorder %s29, %s30
      %p44 = scmp.eq.s32.totalorder %s22, 1
      %p45 = por %p43, %p44
      %p47 = scmp.ne.s32.totalorder %s30, %s46
      %p48 = scmp.eq.s32.totalorder %s22, 0
      %p49 = por %p47, %p48
      %s51 = sadd.s32 %s50, 1
      %p54 = scmp.eq.s32.totalorder %s16, 1
      %p55 = scmp.ne.s32.totalorder %s50, %s52
      %p56 = scmp.eq.s32.totalorder %s16, 0
      %p57 = por %p55, %p56
      %p58 = scmp.ne.s32.totalorder %s50, %s52
      %p59 = scmp.eq.s32.totalorder %s21, 1
      %p60 = por %p58, %p59
      %p61 = scmp.ne.s32.totalorder %s52, %s53
      %p62 = scmp.eq.s32.totalorder %s21, 0
      %p63 = por %p61, %p62
      %p64 = scmp.ne.s32.totalorder %s52, %s53
      %p65 = scmp.eq.s32.totalorder %s22, 1
      %p66 = por %p64, %p65
      %p68 = scmp.ne.s32.totalorder %s53, %s67
      %p69 = scmp.eq.s32.totalorder %s22, 0
      %p70 = por %p68, %p69
      %s72 = sadd.s32 %s71, 1
      %p75 = scmp.eq.s32.totalorder %s16, 1
      %p76 = scmp.ne.s32.totalorder %s71, %s73
      %p77 = scmp.eq.s32.totalorder %s16, 0
      %p78 = por %p76, %p77
      %p79 = scmp.ne.s32.totalorder %s71, %s73
      %p80 = scmp.eq.s32.totalorder %s21, 1
      %p81 = por %p79, %p80
      %p82 = scmp.ne.s32.totalorder %s73, %s74
      %p83 = scmp.eq.s32.totalorder %s21, 0
      %p84 = por %p82, %p83
      %p85 = scmp.ne.s32.totalorder %s73, %s74
      %p86 = scmp.eq.s32.totalorder %s22, 1
      %p87 = por %p85, %p86
      %p89 = scmp.ne.s32.totalorder %s74, %s88
      %p90 = scmp.eq.s32.totalorder %s22, 0
      %p91 = por %p89, %p90
      %s92 = ssub.s32 %s16, %s23
      %p93 = scmp.eq.s32.totalorder %s92, 0
      %s95 = sadd.s32 %s94, 1
      %s96 = scalar_select %p93, %s94, %s95
      %p99 = pneg %p93
      %p100 = scmp.eq.s32.totalorder %s16, 1
      %p101 = por %p99, %p100
      %p102 = scmp.ne.s32.totalorder %s94, %s97
      %p103 = scmp.eq.s32.totalorder %s16, 0
      %p104 = por %p102, %p103
      %p105 = scmp.ne.s32.totalorder %s94, %s97
      %p106 = scmp.eq.s32.totalorder %s21, 1
      %p107 = por %p105, %p106
      %p108 = scmp.ne.s32.totalorder %s97, %s98
      %p109 = scmp.eq.s32.totalorder %s21, 0
      %p110 = por %p108, %p109
      %p111 = scmp.ne.s32.totalorder %s97, %s98
      %p112 = scmp.eq.s32.totalorder %s22, 1
      %p113 = por %p111, %p112
      %p115 = scmp.ne.s32.totalorder %s98, %s114
      %p116 = scmp.eq.s32.totalorder %s22, 0
      %p117 = por %p115, %p116
      %p118 = scmp.le.s32.totalorder 1, %s16
      %p119 = scmp.lt.s32.totalorder %s16, 3
      %p120 = pnand %p118, %p119
      %p121 = pneg %p120
      // Predicated region
      $region9: #{tpu_custom_call.1} parent=5 // pred_check
        _
      $region10: #{tpu_custom_call.1} parent=5 // pred_check_branch
        %123 = sbr.rel (%p120) target = $region12
      $region11: #{tpu_custom_call.1} parent=5 // pred_region
        %s124 = ssub.s32 %s16, 1
        // Predicated region
        $region13: #{tpu_custom_call.1} parent=11 // pred_check
          %p125 = pneg %p63
        $region14: #{tpu_custom_call.1} parent=11 // pred_check_branch
          %127 = sbr.rel (%p125) target = $region16
        $region15: #{tpu_custom_call.1} parent=11 // pred_region
          %s129 = ssub.s32 256, 256
          %130 = vsyncadd [#allocation8], %s129
          %s131 = sshll.u32 [#allocation7], 4
          %s132 = int_to_ptr.vmem [resolvable:$true] %s131
          %137 = dma.hbm_to_vmem [thread:$0]  %s1, 256, %s132, [#allocation8], 128, 128, 8
        $region16: #{tpu_custom_call.1} parent=11 // pred_fallthru
          _
        // Predicated region
        $region17: #{tpu_custom_call.1} parent=11 // pred_check
          %p138 = pneg %p84
        $region18: #{tpu_custom_call.1} parent=11 // pred_check_branch
          %140 = sbr.rel (%p138) target = $region20
        $region19: #{tpu_custom_call.1} parent=11 // pred_region
          _
        $region20: #{tpu_custom_call.1} parent=11 // pred_fallthru
          _
      $region12: #{tpu_custom_call.1} parent=5 // pred_fallthru
        _
      %p141 = scmp.lt.s32.totalorder %s16, 2
      // Predicated region
      $region21: #{tpu_custom_call.1} parent=5 // pred_check
        %p142 = pneg %p141
      $region22: #{tpu_custom_call.1} parent=5 // pred_check_branch
        %144 = sbr.rel (%p142) target = $region24
      $region23: #{tpu_custom_call.1} parent=5 // pred_region
        // Predicated region
        $region25: #{tpu_custom_call.1} parent=23 // pred_check
          %p145 = pneg %p36
        $region26: #{tpu_custom_call.1} parent=23 // pred_check_branch
          %147 = sbr.rel (%p145) target = $region28
        $region27: #{tpu_custom_call.1} parent=23 // pred_region
          %s148 = sand.u32 %s26, 1
          %s149 = scalar_lea.sflag [#allocation5], %s148
          %s150 = sand.u32 %s26, 1
          %s151 = smul.addr %s150, 16
          %s152 = scalar_lea.vmem [#allocation4], %s151
          %s154 = ssub.s32 256, 256
          %155 = vsyncadd %s149, %s154
          %s156 = smul.addr %s16, 2
          %s157 = smul.addr %s156, 128
          %s158 = scalar_lea.hbm %s0, %s157
          %s159 = sshll.u32 %s152, 4
          %s160 = int_to_ptr.vmem [resolvable:$true] %s159
          %165 = dma.hbm_to_vmem [thread:$0]  %s158, 256, %s160, %s149, 128, 128, 8
        $region28: #{tpu_custom_call.1} parent=23 // pred_fallthru
          _
      $region24: #{tpu_custom_call.1} parent=5 // pred_fallthru
        _
      %p166 = scmp.le.s32.totalorder 1, %s16
      %p167 = scmp.lt.s32.totalorder %s16, 3
      %p168 = pnand %p166, %p167
      %p169 = pneg %p168
      // Predicated region
      $region29: #{tpu_custom_call.1} parent=5 // pred_check
        _
      $region30: #{tpu_custom_call.1} parent=5 // pred_check_branch
        %171 = sbr.rel (%p168) target = $region32
      $region31: #{tpu_custom_call.1} parent=5 // pred_region
        %s172 = ssub.s32 %s16, 1
        %s173 = sand.u32 %s29, 1
        %s174 = scalar_lea.sflag [#allocation5], %s173
        %s175 = sand.u32 %s29, 1
        %s176 = smul.addr %s175, 16
        %s177 = scalar_lea.vmem [#allocation4], %s176
        // Predicated region
        $region33: #{tpu_custom_call.1} parent=31 // pred_check
          %p178 = pneg %p42
        $region34: #{tpu_custom_call.1} parent=31 // pred_check_branch
          %180 = sbr.rel (%p178) target = $region36
        $region35: #{tpu_custom_call.1} parent=31 // pred_region
          %181 = dma.done %s174, 256
        $region36: #{tpu_custom_call.1} parent=31 // pred_fallthru
          _
        // Predicated region
        $region37: #{tpu_custom_call.1} parent=31 // pred_check
          %p182 = pneg %p63
        $region38: #{tpu_custom_call.1} parent=31 // pred_check_branch
          %184 = sbr.rel (%p182) target = $region40
        $region39: #{tpu_custom_call.1} parent=31 // pred_region
          %185 = dma.done [#allocation8], 256
        $region40: #{tpu_custom_call.1} parent=31 // pred_fallthru
          _
        %s186 = sand.u32 %s29, 1
        %s187 = scalar_lea.sflag [#allocation5], %s186
        %s188 = sand.u32 %s29, 1
        %s189 = smul.addr %s188, 16
        %s190 = scalar_lea.vmem [#allocation4], %s189
        %p191 = pneg %p42
        %p192 = pneg %p39
        %p193 = pneg %p63
        %p194 = pneg %p60
        %p195 = pneg %p84
        %p196 = pneg %p81
        %p197 = pneg %p110
        %p198 = pneg %p107
        %s199 = sand.u32 %s97, 1
        %s200 = scalar_lea.sflag [#allocation6], %s199
        %s201 = sand.u32 %s97, 1
        %s202 = smul.addr %s201, 16
        %s203 = scalar_lea.vmem [#allocation9], %s202
        %v204 = vld [vmem:[%s177] sm:$0xff]
        %v205 = vld [vmem:[%s177 + $0x8] sm:$0xff]
        %vm206 = vcmask 523264
        %207 = vst.msk [vmem:[#allocation2] sm:$0xff] %vm206, %v204
        %208 = vst.msk [vmem:[#allocation2 + $0x8] sm:$0xff] %vm206, %v205
        %v209 = vld [vmem:[#allocation2 + $0x1] sm:$0xff]
        %v210 = vld [vmem:[#allocation2 + $0x9] sm:$0x7f]
        %v211 = vld [vmem:[%s177] sm:$0xff]
        %v212 = vld [vmem:[%s177 + $0x8] sm:$0x7f]
        %v213 = vadd.f32 %v209, %v211
        %v214 = vadd.f32 %v210, %v212
        %215 = vst.msk [vmem:[#allocation2 + $0x1] sm:$0xff] %vm206, %v213
        %vm216 = vcmask 522240
        %217 = vst.msk [vmem:[#allocation2 + $0x9] sm:$0x7f] %vm216, %v214
        %v218 = vld [vmem:[#allocation2] sm:$0xff]
        %v219 = vld [vmem:[#allocation2 + $0x8] sm:$0x7f]
        %v220 = vld [vmem:[%s177 + $0x1] sm:$0xff]
        %v221 = vld [vmem:[%s177 + $0x9] sm:$0x7f]
        %v222 = vadd.f32 %v218, %v220
        %v223 = vadd.f32 %v219, %v221
        %224 = vst.msk [vmem:[#allocation2] sm:$0xff] %vm206, %v222
        %225 = vst.msk [vmem:[#allocation2 + $0x8] sm:$0x7f] %vm216, %v223
        %v226 = vld [vmem:[#allocation2] sm:$0xff]
        %v227 = vld [vmem:[#allocation2 + $0x8] sm:$0xff]
        %228 = vst.msk [vmem:[#allocation3] sm:$0xff] %vm206, %v226
        %229 = vst.msk [vmem:[#allocation3 + $0x8] sm:$0xff] %vm206, %v227
        %v230 = vld [vmem:[#allocation3] sm:$0xff]
        %v231 = vld [vmem:[#allocation3 + $0x8] sm:$0xff]
        %v232 = vld [vmem:[#allocation2] sm:$0xff]
        %v233 = vld [vmem:[#allocation2 + $0x8] sm:$0xff]
        %236 = vrot.lane.b32.xlu0 %v232, 4
        %v237 = vpop.permute.xlu0 %236
        %238 = vrot.lane.b32.xlu0 %v233, 4
        %v239 = vpop.permute.xlu0 %238
        %v242 = vadd.f32 %v230, %v237
        %v243 = vadd.f32 %v231, %v239
        %vm244 = vcmask 523296
        %245 = vst.msk [vmem:[#allocation3] sm:$0xff] %vm244, %v242
        %246 = vst.msk [vmem:[#allocation3 + $0x8] sm:$0xff] %vm244, %v243
        %v247 = vld [vmem:[#allocation3] sm:$0xff]
        %v248 = vld [vmem:[#allocation3 + $0x8] sm:$0xff]
        %v249 = vld [vmem:[#allocation2] sm:$0xff]
        %v250 = vld [vmem:[#allocation2 + $0x8] sm:$0xff]
        %253 = vrot.lane.b32.xlu0 %v249, 124
        %v254 = vpop.permute.xlu0 %253
        %255 = vrot.lane.b32.xlu0 %v250, 124
        %v256 = vpop.permute.xlu0 %255
        %v259 = vadd.f32 %v247, %v254
        %v260 = vadd.f32 %v248, %v256
        %vm261 = vcmask 490496
        %262 = vst.msk [vmem:[#allocation3] sm:$0xff] %vm261, %v259
        %263 = vst.msk [vmem:[#allocation3 + $0x8] sm:$0xff] %vm261, %v260
        %v264 = vld [vmem:[#allocation3] sm:$0xff]
        %v265 = vld [vmem:[#allocation3 + $0x8] sm:$0xff]
        %v266 = vld [vmem:[#allocation7] sm:$0xff]
        %v267 = vld [vmem:[#allocation7 + $0x8] sm:$0xff]
        %v268 = vmul.f32 %v264, %v266
        %v269 = vmul.f32 %v265, %v267
        %v270 = vld [vmem:[%s2] sm:$0x1]
        %v272 = vlaneseq
        %v273 = vshrl.u32 %v272, 7
        %v274 = vsub.s32 0, %v273
        %v275 = vrot.slane %v270, %v274
        %v277 = vadd.f32 %v268, %v275
        %v278 = vadd.f32 %v269, %v275
        %279 = vst.msk [vmem:[%s203] sm:$0xff] %vm206, %v277
        %280 = vst.msk [vmem:[%s203 + $0x8] sm:$0xff] %vm206, %v278
        %s281 = sand.u32 %s97, 1
        %s282 = scalar_lea.sflag [#allocation6], %s281
        %s283 = sand.u32 %s97, 1
        %s284 = smul.addr %s283, 16
        %s285 = scalar_lea.vmem [#allocation9], %s284
        // Predicated region
        $region41: #{tpu_custom_call.1} parent=31 // pred_check
          %p286 = pneg %p107
        $region42: #{tpu_custom_call.1} parent=31 // pred_check_branch
          %288 = sbr.rel (%p286) target = $region44
        $region43: #{tpu_custom_call.1} parent=31 // pred_region
          %s290 = ssub.s32 256, 256
          %291 = vsyncadd %s282, %s290
          %s292 = smul.addr %s21, 2
          %s293 = smul.addr %s292, 128
          %s294 = scalar_lea.hbm %s3, %s293
          %s295 = sshll.u32 %s285, 4
          %s296 = int_to_ptr.vmem [resolvable:$true] %s295
          %301 = dma.vmem_to_hbm [thread:$0]  %s296, 256, %s294, %s282, 128, 128, 8
        $region44: #{tpu_custom_call.1} parent=31 // pred_fallthru
          _
      $region32: #{tpu_custom_call.1} parent=5 // pred_fallthru
        _
      %p302 = scmp.le.s32.totalorder 2, %s16
      // Predicated region
      $region45: #{tpu_custom_call.1} parent=5 // pred_check
        %p303 = pneg %p302
      $region46: #{tpu_custom_call.1} parent=5 // pred_check_branch
        %305 = sbr.rel (%p303) target = $region48
      $region47: #{tpu_custom_call.1} parent=5 // pred_region
        %s306 = ssub.s32 %s16, 2
        // Predicated region
        $region49: #{tpu_custom_call.1} parent=47 // pred_check
          %p307 = pneg %p113
        $region50: #{tpu_custom_call.1} parent=47 // pred_check_branch
          %309 = sbr.rel (%p307) target = $region52
        $region51: #{tpu_custom_call.1} parent=47 // pred_region
          %s310 = sand.u32 %s98, 1
          %s311 = scalar_lea.sflag [#allocation6], %s310
          %s312 = sand.u32 %s98, 1
          %s313 = smul.addr %s312, 16
          %s314 = scalar_lea.vmem [#allocation9], %s313
          %315 = dma.done %s311, 256
        $region52: #{tpu_custom_call.1} parent=47 // pred_fallthru
          _
      $region48: #{tpu_custom_call.1} parent=5 // pred_fallthru
        _
    $region6: #{tpu_custom_call.1} parent=1 // loop_footer
      %s20 = sadd.s32 1, %s16
    $region7: #{tpu_custom_call.1} parent=1 // loop_footer_branch
      %15 = sbr.rel target = $region3
    $region8: #{tpu_custom_call.1} parent=1 // loop_exit
      _
    %316 = vsyncpa [#allocation5], 1
    %s317 = scalar_lea.sflag [#allocation5], 1
    %318 = vsyncpa %s317, 1
    %319 = vsyncpa [#allocation8], 1
    %320 = vsyncpa [#allocation6], 1
    %s321 = scalar_lea.sflag [#allocation6], 1
    %322 = vsyncpa %s321, 1

</llo_original>
